<compile_context>
chip_gen: v7x
topology: tpu7x:2x2x1
jax: 0.10.0
libtpu: 0.0.40
codegen_flags: <defaults>
</compile_context>

<pallas_src>
import functools

import jax
import jax.numpy as jnp
from jax import lax
from jax.experimental import pallas as pl
from jax.experimental.pallas import tpu as pltpu

_SQRT_HALF = 0.7071067811865476


def _gelu_exact(x):
    # Matches torch.nn.GELU() (erf form), as used by get_act_fn("gelu").
    return 0.5 * x * (1.0 + lax.erf(x * _SQRT_HALF))


def gpt_neox_mlp_kernel(x_ref, w1_ref, b1_ref, w2_ref, b2_ref, o_ref, acc_ref):
    # x_ref : (TM, H)   tile of tokens (resident across the reduction axis)
    # w1_ref: (H, TI)   dense_h_to_4h weight slab (columns j*TI:(j+1)*TI)
    # b1_ref: (1, TI)   dense_h_to_4h bias slab
    # w2_ref: (TI, H)   dense_4h_to_h weight slab (rows j*TI:(j+1)*TI)
    # b2_ref: (1, H)    dense_4h_to_h bias (added once at finalize)
    # o_ref : (TM, H)
    # acc_ref: (TM, H)  f32 accumulator, resident across the intermediate axis
    j = pl.program_id(1)

    @pl.when(j == 0)
    def _init():
        acc_ref[...] = jnp.zeros_like(acc_ref)

    h = jnp.dot(x_ref[...], w1_ref[...], preferred_element_type=jnp.float32)
    h = _gelu_exact(h + b1_ref[...].astype(jnp.float32))
    acc_ref[...] += jnp.dot(
        h.astype(w2_ref.dtype), w2_ref[...], preferred_element_type=jnp.float32
    )

    @pl.when(j == pl.num_programs(1) - 1)
    def _finalize():
        o_ref[...] = (
            acc_ref[...] + b2_ref[...].astype(jnp.float32)
        ).astype(o_ref.dtype)


def _round_up(x, m):
    return ((x + m - 1) // m) * m


def _vmem_capacity_bytes():
    """Physical VMEM per core, with a conservative fallback (v7x = 64 MiB)."""
    try:
        info = pltpu.get_tpu_info()
        cap = getattr(info, "vmem_capacity_bytes", None)
        if cap:
            return int(cap)
    except Exception:
        pass
    return 64 * 1024 * 1024


def _pick_tiles(m, hidden, inter, x_itemsize, w_itemsize, tm_req, ti_req):
    """Pick (token_tile, intermediate_tile) that fit the chip's VMEM."""
    # Token tile: multiple of 8 (sublane), clamped so tiny inputs don't
    # over-allocate. Remainder token tiles are padded by Pallas; padded rows run
    # through GELU harmlessly and their stores are masked.
    tm = min(_round_up(tm_req, 8), _round_up(m, 8))

    if inter % 128 != 0:
        # Small / odd configs: single reduction step over the full dim.
        return tm, inter

    budget = int(_vmem_capacity_bytes() * 0.75)  # headroom for compiler scratch
    fixed = (
        2 * 2 * tm * hidden * x_itemsize  # x + out tiles, double-buffered
        + tm * hidden * 4                 # f32 accumulator
        + 4 * hidden * w_itemsize         # b2 (tiny)
    )
    # W1 slab (H, TI) + W2 slab (TI, H), each double-buffered.
    weight_bytes_per_ti = 4 * hidden * w_itemsize
    ti_cap = max((budget - fixed) // weight_bytes_per_ti, 128)
    ti_cap = (ti_cap // 128) * 128

    ti = inter if ti_req is None else min(_round_up(ti_req, 128), inter)
    ti = max(min(ti, ti_cap), 128)
    # Must divide `inter` exactly so no garbage-padded weight rows/cols leak
    # into the accumulator (terminates: 128 divides `inter`).
    while inter % ti != 0:
        ti -= 128
    return tm, ti


@functools.partial(jax.jit, static_argnums=(5, 6))
def _mlp_call(x, w1, b1, w2, b2, tm, ti):
    m, hidden = x.shape
    inter = w1.shape[1]
    grid = (pl.cdiv(m, tm), inter // ti)

    xbytes = jnp.dtype(x.dtype).itemsize
    wbytes = jnp.dtype(w1.dtype).itemsize
    bbytes = jnp.dtype(b1.dtype).itemsize

    # Rough VMEM footprint: double-buffered weight slabs + x/out tiles + f32 acc.
    vmem_needed = (
        4 * hidden * ti * wbytes
        + 4 * tm * hidden * xbytes
        + tm * hidden * 4
        + 2 * (ti + hidden) * bbytes
    )
    vmem_limit = min(
        _vmem_capacity_bytes(),
        max(32 * 1024 * 1024, int(vmem_needed) + (4 << 20)),
    )

    cost = pl.CostEstimate(
        flops=4 * m * hidden * inter,          # two matmuls
        transcendentals=m * inter,             # erf per intermediate activation
        bytes_accessed=(
            x.size * xbytes
            + (w1.size + w2.size) * wbytes * grid[0]  # weights re-streamed per token tile
            + b1.size * bbytes
            + b2.size * bbytes
            + m * hidden * xbytes
        ),
    )

    return pl.pallas_call(
        gpt_neox_mlp_kernel,
        out_shape=jax.ShapeDtypeStruct((m, hidden), x.dtype),
        grid_spec=pltpu.PrefetchScalarGridSpec(
            num_scalar_prefetch=0,
            grid=grid,
            in_specs=[
                pl.BlockSpec((tm, hidden), lambda i, j: (i, 0)),
                pl.BlockSpec((hidden, ti), lambda i, j: (0, j)),
                pl.BlockSpec((1, ti), lambda i, j: (0, j)),
                pl.BlockSpec((ti, hidden), lambda i, j: (j, 0)),
                pl.BlockSpec((1, hidden), lambda i, j: (0, 0)),
            ],
            out_specs=pl.BlockSpec((tm, hidden), lambda i, j: (i, 0)),
            scratch_shapes=[pltpu.VMEM((tm, hidden), jnp.float32)],
        ),
        compiler_params=pltpu.CompilerParams(
            dimension_semantics=("parallel", "arbitrary"),
            vmem_limit_bytes=vmem_limit,
        ),
        cost_estimate=cost,
    )(x, w1, b1, w2, b2)


def gpt_neox_mlp(x, w1, b1, w2, b2, *, tm=256, ti=None):
    """GPTNeoXMLP forward: GELU(x @ w1 + b1) @ w2 + b2."""
    b1 = b1.reshape(1, -1)
    b2 = b2.reshape(1, -1)
    m, hidden = x.shape
    inter = w1.shape[1]
    tm_eff, ti_eff = _pick_tiles(
        m, hidden, inter,
        jnp.dtype(x.dtype).itemsize, jnp.dtype(w1.dtype).itemsize,
        tm, ti,
    )
    return _mlp_call(x, w1, b1, w2, b2, tm_eff, ti_eff)


def reference_mlp(x, w1, b1, w2, b2):
    h = x.astype(jnp.float32) @ w1.astype(jnp.float32) + b1.reshape(1, -1).astype(jnp.float32)
    h = _gelu_exact(h)
    o = h @ w2.astype(jnp.float32) + b2.reshape(1, -1).astype(jnp.float32)
    return o.astype(x.dtype)


def _make_inputs(key, num_tokens, hidden_size, intermediate_size, dtype=jnp.float32):
    kx, kw1, kb1, kw2, kb2 = jax.random.split(key, 5)
    x = jax.random.normal(kx, (num_tokens, hidden_size), dtype=dtype)
    w1 = jax.random.normal(kw1, (hidden_size, intermediate_size), dtype) * 0.02
    b1 = jax.random.normal(kb1, (1, intermediate_size), dtype) * 0.02
    w2 = jax.random.normal(kw2, (intermediate_size, hidden_size), dtype) * 0.02
    b2 = jax.random.normal(kb2, (1, hidden_size), dtype) * 0.02
    return x, w1, b1, w2, b2


if __name__ == "__main__":
    key = jax.random.PRNGKey(0)
    k0, k1 = jax.random.split(key)

    # Case 1: small GPT-NeoX-like config (hidden=32, intermediate=128, seq=8),
    # auto tile selection (single grid step).
    x, w1, b1, w2, b2 = _make_inputs(k0, 8, 32, 128)
    out = jax.block_until_ready(gpt_neox_mlp(x, w1, b1, w2, b2))
    ref = reference_mlp(x, w1, b1, w2, b2)
    assert out.shape == (8, 32)
    assert jnp.allclose(out, ref, atol=2e-5, rtol=2e-5), "mismatch vs reference (case 1)"

    # Case 2: exercises the full tiling (3 token tiles, one partial; 4
    # intermediate reduction steps with accumulator init/finalize).
    x, w1, b1, w2, b2 = _make_inputs(k1, 40, 128, 512)
    out = jax.block_until_ready(gpt_neox_mlp(x, w1, b1, w2, b2, tm=16, ti=128))
    ref = reference_mlp(x, w1, b1, w2, b2)
    assert out.shape == (40, 128)
    assert jnp.allclose(out, ref, atol=1e-4, rtol=1e-4), "mismatch vs reference (case 2)"

    print("KERNEL_OK")
</pallas_src>

<mosaic_0001>
module attributes {stable_mosaic.version = 11 : i64} {
  func.func @gpt_neox_mlp_kernel(%arg0: i32, %arg1: i32, %arg2: memref<8x32xf32, #tpu.memory_space<vmem>>, %arg3: memref<32x128xf32, #tpu.memory_space<vmem>>, %arg4: memref<1x128xf32, #tpu.memory_space<vmem>>, %arg5: memref<128x32xf32, #tpu.memory_space<vmem>>, %arg6: memref<1x32xf32, #tpu.memory_space<vmem>>, %arg7: memref<8x32xf32, #tpu.memory_space<vmem>>, %arg8: memref<8x32xf32, #tpu.memory_space<vmem>>) attributes {dimension_semantics = [#tpu.dimension_semantics<parallel>, #tpu.dimension_semantics<arbitrary>], iteration_bounds = array<i64: 1, 1>, scalar_prefetch = 0 : i64, scratch_operands = 1 : i64, tpu.core_type = #tpu.core_type<tc>, window_params = [{transform_indices = @transform_0, window_bounds = array<i64: 8, 32>}, {transform_indices = @transform_1, window_bounds = array<i64: 32, 128>}, {transform_indices = @transform_2, window_bounds = array<i64: 1, 128>}, {transform_indices = @transform_3, window_bounds = array<i64: 128, 32>}, {pipeline_mode = #tpu.pipeline_mode<synchronous>, transform_indices = @transform_4, window_bounds = array<i64: 1, 32>}, {transform_indices = @transform_5, window_bounds = array<i64: 8, 32>}]} {
    %c0_i32 = arith.constant 0 : i32
    %0 = arith.cmpi eq, %arg1, %c0_i32 : i32
    %1 = arith.extui %0 : i1 to i32
    %c0_i32_0 = arith.constant 0 : i32
    %2 = arith.cmpi ne, %1, %c0_i32_0 : i32
    scf.if %2 {
      %cst_18 = arith.constant 0.000000e+00 : f32
      %25 = vector.broadcast %cst_18 : f32 to vector<8x32xf32>
      %c0_19 = arith.constant 0 : index
      %c0_20 = arith.constant 0 : index
      %26 = vector.load %arg8[%c0_19, %c0_20] : memref<8x32xf32, #tpu.memory_space<vmem>>, vector<8x32xf32>
      tpu.vector_store %arg8[%c0_19, %c0_20], %25 {strides = array<i32>} : memref<8x32xf32, #tpu.memory_space<vmem>>, vector<8x32xf32>,
    } else {
    }
    %c0 = arith.constant 0 : index
    %c0_1 = arith.constant 0 : index
    %3 = vector.load %arg2[%c0, %c0_1] : memref<8x32xf32, #tpu.memory_space<vmem>>, vector<8x32xf32>
    %c0_2 = arith.constant 0 : index
    %c0_3 = arith.constant 0 : index
    %4 = vector.load %arg3[%c0_2, %c0_3] : memref<32x128xf32, #tpu.memory_space<vmem>>, vector<32x128xf32>
    %cst = arith.constant dense<0.000000e+00> : vector<8x128xf32>
    %5 = tpu.matmul %3, %4, %cst {dimension_numbers = #tpu.dot_dimension_numbers<[1], [0], [0], [1], [0, 0, 1, 1], [], []>} : vector<8x32xf32>, vector<32x128xf32>, vector<8x128xf32> -> vector<8x128xf32>
    %c0_4 = arith.constant 0 : index
    %c0_5 = arith.constant 0 : index
    %6 = vector.load %arg4[%c0_4, %c0_5] : memref<1x128xf32, #tpu.memory_space<vmem>>, vector<1x128xf32>
    %7 = vector.broadcast %6 : vector<1x128xf32> to vector<8x128xf32>
    %8 = arith.addf %5, %7 : vector<8x128xf32>
    %cst_6 = arith.constant 5.000000e-01 : f32
    %9 = vector.broadcast %cst_6 : f32 to vector<8x128xf32>
    %10 = arith.mulf %9, %8 : vector<8x128xf32>
    %cst_7 = arith.constant 0.707106769 : f32
    %11 = vector.broadcast %cst_7 : f32 to vector<8x128xf32>
    %12 = arith.mulf %8, %11 : vector<8x128xf32>
    %13 = math.erf %12 : vector<8x128xf32>
    %cst_8 = arith.constant 1.000000e+00 : f32
    %14 = vector.broadcast %cst_8 : f32 to vector<8x128xf32>
    %15 = arith.addf %14, %13 : vector<8x128xf32>
    %16 = arith.mulf %10, %15 : vector<8x128xf32>
    %c0_9 = arith.constant 0 : index
    %c0_10 = arith.constant 0 : index
    %17 = vector.load %arg8[%c0_9, %c0_10] : memref<8x32xf32, #tpu.memory_space<vmem>>, vector<8x32xf32>
    %c0_11 = arith.constant 0 : index
    %c0_12 = arith.constant 0 : index
    %18 = vector.load %arg5[%c0_11, %c0_12] : memref<128x32xf32, #tpu.memory_space<vmem>>, vector<128x32xf32>
    %cst_13 = arith.constant dense<0.000000e+00> : vector<8x32xf32>
    %19 = tpu.matmul %16, %18, %cst_13 {dimension_numbers = #tpu.dot_dimension_numbers<[1], [0], [0], [1], [0, 0, 1, 1], [], []>} : vector<8x128xf32>, vector<128x32xf32>, vector<8x32xf32> -> vector<8x32xf32>
    %20 = arith.addf %17, %19 : vector<8x32xf32>
    %c0_14 = arith.constant 0 : index
    %c0_15 = arith.constant 0 : index
    %21 = vector.load %arg8[%c0_14, %c0_15] : memref<8x32xf32, #tpu.memory_space<vmem>>, vector<8x32xf32>
    tpu.vector_store %arg8[%c0_14, %c0_15], %20 {strides = array<i32>} : memref<8x32xf32, #tpu.memory_space<vmem>>, vector<8x32xf32>,
    %c0_i32_16 = arith.constant 0 : i32
    %22 = arith.cmpi eq, %arg1, %c0_i32_16 : i32
    %23 = arith.extui %22 : i1 to i32
    %c0_i32_17 = arith.constant 0 : i32
    %24 = arith.cmpi ne, %23, %c0_i32_17 : i32
    scf.if %24 {
      %c0_18 = arith.constant 0 : index
      %c0_19 = arith.constant 0 : index
      %25 = vector.load %arg8[%c0_18, %c0_19] : memref<8x32xf32, #tpu.memory_space<vmem>>, vector<8x32xf32>
      %c0_20 = arith.constant 0 : index
      %c0_21 = arith.constant 0 : index
      %26 = vector.load %arg6[%c0_20, %c0_21] : memref<1x32xf32, #tpu.memory_space<vmem>>, vector<1x32xf32>
      %27 = vector.broadcast %26 : vector<1x32xf32> to vector<8x32xf32>
      %28 = arith.addf %25, %27 : vector<8x32xf32>
      %c0_22 = arith.constant 0 : index
      %c0_23 = arith.constant 0 : index
      %29 = vector.load %arg7[%c0_22, %c0_23] : memref<8x32xf32, #tpu.memory_space<vmem>>, vector<8x32xf32>
      tpu.vector_store %arg7[%c0_22, %c0_23], %28 {strides = array<i32>} : memref<8x32xf32, #tpu.memory_space<vmem>>, vector<8x32xf32>,
    } else {
    }
    return
  }
  func.func @transform_0(%arg0: i32, %arg1: i32) -> (i32, i32) {
    %c0_i32 = arith.constant 0 : i32
    %c0_i32_0 = arith.constant 0 : i32
    return %arg0, %c0_i32 : i32, i32
  }
  func.func @transform_1(%arg0: i32, %arg1: i32) -> (i32, i32) {
    %c0_i32 = arith.constant 0 : i32
    %c0_i32_0 = arith.constant 0 : i32
    return %c0_i32, %arg1 : i32, i32
  }
  func.func @transform_2(%arg0: i32, %arg1: i32) -> (i32, i32) {
    %c0_i32 = arith.constant 0 : i32
    %c0_i32_0 = arith.constant 0 : i32
    return %c0_i32, %arg1 : i32, i32
  }
  func.func @transform_3(%arg0: i32, %arg1: i32) -> (i32, i32) {
    %c0_i32 = arith.constant 0 : i32
    %c0_i32_0 = arith.constant 0 : i32
    return %arg1, %c0_i32 : i32, i32
  }
  func.func @transform_4(%arg0: i32, %arg1: i32) -> (i32, i32) {
    %c0_i32 = arith.constant 0 : i32
    %c0_i32_0 = arith.constant 0 : i32
    %c0_i32_1 = arith.constant 0 : i32
    return %c0_i32, %c0_i32_0 : i32, i32
  }
  func.func @transform_5(%arg0: i32, %arg1: i32) -> (i32, i32) {
    %c0_i32 = arith.constant 0 : i32
    %c0_i32_0 = arith.constant 0 : i32
    return %arg0, %c0_i32 : i32, i32
  }
}

</mosaic_0001>

<llo_original>
// kernel: _mlp_call.1
$region0: #{_mlp_call.1}
  #allocation0 [shape = 'u32[]', space=smem, size = 0x4, offset = 0x4, fixed_abs, tag = 'smem constant byte address 0x4 - core index']
  #allocation1 [shape = 'u32[144,128]{1,0:T(1,128)}', space=vmem, size = 0x12000, scoped, tag = 'internal scratch']
  #allocation2 [shape = 'f32[8,32]{1,0:T(8,128)}', space=vmem, size = 0x1000, scoped, tag = 'scratch operand']
  %s0 = inlined_call_operand.vmem [shape: f32[8,32], index: 0, kind: input, shape index: {}]
  %s1 = inlined_call_operand.vmem [shape: f32[32,128], index: 1, kind: input, shape index: {}]
  %s2 = inlined_call_operand.vmem [shape: f32[1,128], index: 2, kind: input, shape index: {}]
  %s3 = inlined_call_operand.vmem [shape: f32[128,32], index: 3, kind: input, shape index: {}]
  %s4 = inlined_call_operand.vmem [shape: f32[1,32], index: 4, kind: input, shape index: {}]
  %s5 = inlined_call_operand.hbm [shape: f32[8,32], index: 5, kind: output, shape index: {}]
  %s6 = sld [smem:[#allocation0]]
  $region38: #{_mlp_call.1} parent=0
    _
  %s8 = ssub.s32 1, %s6
  %s9 = scalar_select 0, %s8, %s6
  $region1: #{_mlp_call.1} parent=0
    #allocation3 [shape = 'u8[4096]{0}', space=vmem, size = 0x1000, scoped, tag = 'output window, operand 0, single buffered']
    #allocation4 [shape = 's32[1]{0}', space=sflag, size = 0x4, scoped, tag = 'scoped memory for _mlp_call.1']
    %10 = vsyncpa [#allocation4], 0
    // Predicated region
    $region2: #{_mlp_call.1} parent=1 // pred_check
      _
    $region3: #{_mlp_call.1} parent=1 // pred_check_branch
      %12 = sbr.rel (0) target = $region5
    $region4: #{_mlp_call.1} parent=1 // pred_region
      _
    $region5: #{_mlp_call.1} parent=1 // pred_fallthru
      _
    // Predicated region
    $region6: #{_mlp_call.1} parent=1 // pred_check
      _
    $region7: #{_mlp_call.1} parent=1 // pred_check_branch
      %14 = sbr.rel (0) target = $region9
    $region8: #{_mlp_call.1} parent=1 // pred_region
      _
    $region9: #{_mlp_call.1} parent=1 // pred_fallthru
      _
    // Predicated region
    $region10: #{_mlp_call.1} parent=1 // pred_check
      _
    $region11: #{_mlp_call.1} parent=1 // pred_check_branch
      %16 = sbr.rel (0) target = $region13
    $region12: #{_mlp_call.1} parent=1 // pred_region
      _
    $region13: #{_mlp_call.1} parent=1 // pred_fallthru
      _
    // Predicated region
    $region14: #{_mlp_call.1} parent=1 // pred_check
      _
    $region15: #{_mlp_call.1} parent=1 // pred_check_branch
      %18 = sbr.rel (0) target = $region17
    $region16: #{_mlp_call.1} parent=1 // pred_region
      _
    $region17: #{_mlp_call.1} parent=1 // pred_fallthru
      _
    // Predicated region
    $region18: #{_mlp_call.1} parent=1 // pred_check
      _
    $region19: #{_mlp_call.1} parent=1 // pred_check_branch
      %20 = sbr.rel (0) target = $region21
    $region20: #{_mlp_call.1} parent=1 // pred_region
      _
    $region21: #{_mlp_call.1} parent=1 // pred_fallthru
      _
    %p21 = scmp.eq.s32.totalorder 0, 0
    // Predicated region
    $region22: #{_mlp_call.1} parent=1 // pred_check
      %p22 = pneg %p21
    $region23: #{_mlp_call.1} parent=1 // pred_check_branch
      %24 = sbr.rel (%p22) target = $region25
    $region24: #{_mlp_call.1} parent=1 // pred_region
      %vm25 = vcmask 261120
      %26 = vst.msk [vmem:[#allocation2] sm:$0xff] %vm25, 0.0
    $region25: #{_mlp_call.1} parent=1 // pred_fallthru
      _
    %v27 = vld [vmem:[%s0] sm:$0xff]
    %v28 = vld [vmem:[%s1] sm:$0xff]
    %v29 = vld [vmem:[%s1 + $0x8] sm:$0xff]
    %v30 = vld [vmem:[%s1 + $0x10] sm:$0xff]
    %v31 = vld [vmem:[%s1 + $0x18] sm:$0xff]
    %v32 = vld [vmem:[%s2] sm:$0x1]
    %v34 = vlaneseq
    %v35 = vshrl.u32 %v34, 7
    %v36 = vsub.s32 0, %v35
    %v37 = vrot.slane %v32, %v36
    %vm39 = vcmask 261120
    %v41 = vsel %vm39, %v27, 0
    %43 = vmatprep.subr.mxu0 0.0
    %44 = vmatpush1.msra.mxu0 %v28
    %45 = vmatprep.subr.mxu0 0.0
    %46 = vmatpush1.msra.mxu0 %v29
    %47 = vmatprep.subr.mxu0 0.0
    %48 = vmatpush1.msra.mxu0 %v30
    %49 = vmatprep.subr.mxu0 0.0
    %50 = vmatpush1.msra.mxu0 %v31
    %51 = vmatprep.subr.mxu0 0.0
    %52 = vmatpush1.msra.mxu0 0.0
    %53 = vmatprep.subr.mxu0 0.0
    %54 = vmatpush1.msra.mxu0 0.0
    %55 = vmatprep.subr.mxu0 0.0
    %56 = vmatpush1.msra.mxu0 0.0
    %57 = vmatprep.subr.mxu0 0.0
    %58 = vmatpush1.msra.mxu0 0.0
    %59 = vmatprep.subr.mxu0 0.0
    %60 = vmatpush1.msra.mxu0 0.0
    %61 = vmatprep.subr.mxu0 0.0
    %62 = vmatpush1.msra.mxu0 0.0
    %63 = vmatprep.subr.mxu0 0.0
    %64 = vmatpush1.msra.mxu0 0.0
    %65 = vmatprep.subr.mxu0 0.0
    %66 = vmatpush1.msra.mxu0 0.0
    %67 = vmatprep.subr.mxu0 0.0
    %68 = vmatpush1.msra.mxu0 0.0
    %69 = vmatprep.subr.mxu0 0.0
    %70 = vmatpush1.msra.mxu0 0.0
    %71 = vmatprep.subr.mxu0 0.0
    %72 = vmatpush1.msra.mxu0 0.0
    %73 = vmatprep.subr.mxu0 0.0
    %74 = vmatpush1.msra.mxu0 0.0
    %75 = vmatprep.subr.mxu0 0.0
    %76 = vmatpush1.msra.mxu0 0.0
    %77 = vmatprep.subr.mxu0 0.0
    %78 = vmatpush1.msra.mxu0 0.0
    %79 = vmatprep.subr.mxu0 0.0
    %80 = vmatpush1.msra.mxu0 0.0
    %81 = vmatprep.subr.mxu0 0.0
    %82 = vmatpush1.msra.mxu0 0.0
    %83 = vmatprep.subr.mxu0 0.0
    %84 = vmatpush1.msra.mxu0 0.0
    %85 = vmatprep.subr.mxu0 0.0
    %86 = vmatpush1.msra.mxu0 0.0
    %87 = vmatprep.subr.mxu0 0.0
    %88 = vmatpush1.msra.mxu0 0.0
    %89 = vmatprep.subr.mxu0 0.0
    %90 = vmatpush1.msra.mxu0 0.0
    %91 = vmatprep.subr.mxu0 0.0
    %92 = vmatpush1.msra.mxu0 0.0
    %93 = vmatprep.subr.mxu0 0.0
    %94 = vmatpush1.msra.mxu0 0.0
    %95 = vmatprep.subr.mxu0 0.0
    %96 = vmatpush1.msra.mxu0 0.0
    %97 = vmatprep.subr.mxu0 0.0
    %98 = vmatpush1.msra.mxu0 0.0
    %99 = vmatprep.subr.mxu0 0.0
    %100 = vmatpush1.msra.mxu0 0.0
    %101 = vmatprep.subr.mxu0 0.0
    %102 = vmatpush1.msra.mxu0 0.0
    %103 = vmatprep.subr.mxu0 0.0
    %104 = vmatpush1.msra.mxu0 0.0
    %105 = vmatprep.subr.mxu0 0.0
    %106 = vmatpush1.msra.mxu0 0.0
    %107 = vmatprep.mubr.f32.mxu0 0.0
    %108 = vmatmul.mubr.f32.gmra.mrb[0].mxu0 %v41
    %v109 = vpop.f32.mrb[0].mxu0
    %v110 = vadd.f32 %v37, %v109
    %v111 = vpop.f32.mrb[0].mxu0
    %112 = vdwg.mxu0
    %v113 = vmul.f32 %v110, 0.5
    %v114 = vmul.f32 %v110, 0.70710677
    %v115 = verf.f32.pop %v114
    %v116 = vadd.f32 %v115, 1.0
    %v117 = vmul.f32 %v113, %v116
    %v118 = vld [vmem:[#allocation2] sm:$0xff]
    %v119 = vld [vmem:[%s3] sm:$0xff]
    %v120 = vld [vmem:[%s3 + $0x8] sm:$0xff]
    %v121 = vld [vmem:[%s3 + $0x10] sm:$0xff]
    %v122 = vld [vmem:[%s3 + $0x18] sm:$0xff]
    %v123 = vld [vmem:[%s3 + $0x20] sm:$0xff]
    %v124 = vld [vmem:[%s3 + $0x28] sm:$0xff]
    %v125 = vld [vmem:[%s3 + $0x30] sm:$0xff]
    %v126 = vld [vmem:[%s3 + $0x38] sm:$0xff]
    %v127 = vld [vmem:[%s3 + $0x40] sm:$0xff]
    %v128 = vld [vmem:[%s3 + $0x48] sm:$0xff]
    %v129 = vld [vmem:[%s3 + $0x50] sm:$0xff]
    %v130 = vld [vmem:[%s3 + $0x58] sm:$0xff]
    %v131 = vld [vmem:[%s3 + $0x60] sm:$0xff]
    %v132 = vld [vmem:[%s3 + $0x68] sm:$0xff]
    %v133 = vld [vmem:[%s3 + $0x70] sm:$0xff]
    %v134 = vld [vmem:[%s3 + $0x78] sm:$0xff]
    %135 = vmatprep.subr.mxu0 0.0
    %136 = vmatpush1.msra.mxu0 %v119
    %137 = vmatprep.subr.mxu0 0.0
    %138 = vmatpush1.msra.mxu0 %v120
    %139 = vmatprep.subr.mxu0 0.0
    %140 = vmatpush1.msra.mxu0 %v121
    %141 = vmatprep.subr.mxu0 0.0
    %142 = vmatpush1.msra.mxu0 %v122
    %143 = vmatprep.subr.mxu0 0.0
    %144 = vmatpush1.msra.mxu0 %v123
    %145 = vmatprep.subr.mxu0 0.0
    %146 = vmatpush1.msra.mxu0 %v124
    %147 = vmatprep.subr.mxu0 0.0
    %148 = vmatpush1.msra.mxu0 %v125
    %149 = vmatprep.subr.mxu0 0.0
    %150 = vmatpush1.msra.mxu0 %v126
    %151 = vmatprep.subr.mxu0 0.0
    %152 = vmatpush1.msra.mxu0 %v127
    %153 = vmatprep.subr.mxu0 0.0
    %154 = vmatpush1.msra.mxu0 %v128
    %155 = vmatprep.subr.mxu0 0.0
    %156 = vmatpush1.msra.mxu0 %v129
    %157 = vmatprep.subr.mxu0 0.0
    %158 = vmatpush1.msra.mxu0 %v130
    %159 = vmatprep.subr.mxu0 0.0
    %160 = vmatpush1.msra.mxu0 %v131
    %161 = vmatprep.subr.mxu0 0.0
    %162 = vmatpush1.msra.mxu0 %v132
    %163 = vmatprep.subr.mxu0 0.0
    %164 = vmatpush1.msra.mxu0 %v133
    %165 = vmatprep.subr.mxu0 0.0
    %166 = vmatpush1.msra.mxu0 %v134
    %167 = vmatprep.subr.mxu0 0.0
    %168 = vmatpush1.msra.mxu0 0.0
    %169 = vmatprep.subr.mxu0 0.0
    %170 = vmatpush1.msra.mxu0 0.0
    %171 = vmatprep.subr.mxu0 0.0
    %172 = vmatpush1.msra.mxu0 0.0
    %173 = vmatprep.subr.mxu0 0.0
    %174 = vmatpush1.msra.mxu0 0.0
    %175 = vmatprep.subr.mxu0 0.0
    %176 = vmatpush1.msra.mxu0 0.0
    %177 = vmatprep.subr.mxu0 0.0
    %178 = vmatpush1.msra.mxu0 0.0
    %179 = vmatprep.subr.mxu0 0.0
    %180 = vmatpush1.msra.mxu0 0.0
    %181 = vmatprep.subr.mxu0 0.0
    %182 = vmatpush1.msra.mxu0 0.0
    %183 = vmatprep.subr.mxu0 0.0
    %184 = vmatpush1.msra.mxu0 0.0
    %185 = vmatprep.subr.mxu0 0.0
    %186 = vmatpush1.msra.mxu0 0.0
    %187 = vmatprep.subr.mxu0 0.0
    %188 = vmatpush1.msra.mxu0 0.0
    %189 = vmatprep.subr.mxu0 0.0
    %190 = vmatpush1.msra.mxu0 0.0
    %191 = vmatprep.subr.mxu0 0.0
    %192 = vmatpush1.msra.mxu0 0.0
    %193 = vmatprep.subr.mxu0 0.0
    %194 = vmatpush1.msra.mxu0 0.0
    %195 = vmatprep.subr.mxu0 0.0
    %196 = vmatpush1.msra.mxu0 0.0
    %197 = vmatprep.subr.mxu0 0.0
    %198 = vmatpush1.msra.mxu0 0.0
    %199 = vmatprep.mubr.f32.mxu0 0.0
    %200 = vmatmul.mubr.f32.gmra.mrb[0].mxu0 %v117
    %v201 = vpop.f32.mrb[0].mxu0
    %v202 = vadd.f32 0.0, %v201
    %v203 = vpop.f32.mrb[0].mxu0
    %204 = vdwg.mxu0
    %v205 = vadd.f32 %v118, %v202
    %206 = vst.msk [vmem:[#allocation2] sm:$0xff] %vm39, %v205
    // Predicated region
    $region26: #{_mlp_call.1} parent=1 // pred_check
      %p207 = pneg %p21
    $region27: #{_mlp_call.1} parent=1 // pred_check_branch
      %209 = sbr.rel (%p207) target = $region29
    $region28: #{_mlp_call.1} parent=1 // pred_region
      %v210 = vld [vmem:[#allocation2] sm:$0xff]
      %v211 = vld [vmem:[%s4] sm:$0x1]
      %v213 = vlaneseq
      %v214 = vshrl.u32 %v213, 7
      %v215 = vsub.s32 0, %v214
      %v216 = vrot.slane %v211, %v215
      %v218 = vadd.f32 %v210, %v216
      %219 = vst.msk [vmem:[#allocation3] sm:$0xff] %vm39, %v218
    $region29: #{_mlp_call.1} parent=1 // pred_fallthru
      _
    // Predicated region
    $region30: #{_mlp_call.1} parent=1 // pred_check
      _
    $region31: #{_mlp_call.1} parent=1 // pred_check_branch
      %221 = sbr.rel (0) target = $region33
    $region32: #{_mlp_call.1} parent=1 // pred_region
      %s223 = ssub.s32 128, 128
      %224 = vsyncadd [#allocation4], %s223
      %s226 = sshll.u32 [#allocation3], 4
      %s227 = int_to_ptr.vmem [resolvable:$true] %s226
      %229 = dma.vmem_to_hbm [thread:$0]  %s227, 128, %s5, [#allocation4]
    $region33: #{_mlp_call.1} parent=1 // pred_fallthru
      _
    // Predicated region
    $region34: #{_mlp_call.1} parent=1 // pred_check
      _
    $region35: #{_mlp_call.1} parent=1 // pred_check_branch
      %231 = sbr.rel (0) target = $region37
    $region36: #{_mlp_call.1} parent=1 // pred_region
      %232 = dma.done [#allocation4], 128
    $region37: #{_mlp_call.1} parent=1 // pred_fallthru
      _
    %233 = vsyncpa [#allocation4], 1

</llo_original>
